<compile_context>
chip_gen: v7x
topology: tpu7x:2x2x1
jax: 0.10.0
libtpu: 0.0.40
codegen_flags: <defaults>
</compile_context>

<pallas_src>
import jax
import jax.numpy as jnp
from jax import lax
from jax.experimental import pallas as pl
from jax.experimental.pallas import tpu as pltpu

EPS = 1e-5  # nn.BatchNorm2d default eps
_VMEM_LIMIT = 32 * 1024 * 1024  # keep <= 32 MiB: safe on v7x (64 MiB physical/TC)


def _round_up(x, m):
    return (x + m - 1) // m * m


# ----------------------------- Pallas kernels -------------------------------

def gram_stats_kernel(x_ref, s_ref, g_ref):
    """Resident accumulators over the M axis:
       s += sum_m x_m          (Cin, 1)
       G += sum_m x_m x_m^T    (Cin, Cin)
    Zero-padded tail columns (if any) contribute nothing, so no masking."""
    @pl.when(pl.program_id(0) == 0)
    def _init():
        s_ref[...] = jnp.zeros_like(s_ref)
        g_ref[...] = jnp.zeros_like(g_ref)

    xt = x_ref[...]                                   # (Cin, tm) f32
    s_ref[...] += jnp.sum(xt, axis=1, keepdims=True)
    # X @ X^T contracting over the lane (pixel) dimension of both operands.
    g_ref[...] += lax.dot_general(
        xt, xt, dimension_numbers=(((1,), (1,)), ((), ())),
        preferred_element_type=jnp.float32)


def fused_deconv_bn_relu_kernel(w_ref, shift_ref, x_ref, o_ref):
    """o tile = relu(W_scaled @ x tile + shift).  ConvTranspose2d k=2,s=2 has no
    output overlap, so the deconv is a pure per-pixel matmul; the BN scale is
    pre-folded into W_scaled and the BN shift is the per-row bias."""
    y = jnp.dot(w_ref[...], x_ref[...], preferred_element_type=jnp.float32)
    o_ref[...] = jnp.maximum(y + shift_ref[...], 0.0).astype(o_ref.dtype)


# ------------------------------- Wrapper ------------------------------------

def _pick_tile(M, Cin, R, cap=16384, budget=20 * 1024 * 1024):
    """Pick tm (multiple of 128) preferring an exact divisor of M (-> Mp == M,
    no padded tail, no output slice).  Budget double-buffered x / o blocks plus
    ~2 f32 temporaries of the output tile."""
    bytes_per_col = 4 * (2 * Cin + 2 * R + 2 * R)
    vmem_cap = max(128, (budget // bytes_per_col) // 128 * 128)
    cap = min(cap, vmem_cap)
    if M % 128 == 0:
        t = (min(cap, M) // 128) * 128
        while t >= 128:
            if M % t == 0:
                return t, M
            t -= 128
    tm = min(cap, _round_up(M, 128))
    return tm, _round_up(M, tm)


def trans_basic_conv2d(x_nchw, weight, gamma, beta):
    """x_nchw: (N, Cin, H, W); weight: (Cin, Cout, 2, 2) (PyTorch deconv layout);
    gamma, beta: (Cout,).  Returns (N, Cout, 2H, 2W) float32."""
    N, Cin, H, W = x_nchw.shape
    Cin_w, Cout, kh, kw = weight.shape
    assert Cin == Cin_w and kh == 2 and kw == 2
    Hout, Wout = 2 * H, 2 * W
    M = N * H * W                        # input pixels (lane dimension)
    R = 4 * Cout                         # rows = (2x2 taps) x Cout

    tm, Mp = _pick_tile(M, Cin, R)
    grid = (Mp // tm,)

    # ---- glue: NCHW -> (Cin, M) "pixels on lanes" layout (f32 throughout)
    x_t = jnp.transpose(x_nchw, (1, 0, 2, 3)).reshape(Cin, M).astype(jnp.float32)
    if Mp != M:
        x_t = jnp.pad(x_t, ((0, 0), (0, Mp - M)))
    # weight (Cin, Cout, 2, 2) -> (2, 2, Cout, Cin) -> (R, Cin); row = (a*2+b)*Cout + k
    w_flat = jnp.transpose(weight, (2, 3, 1, 0)).reshape(R, Cin).astype(jnp.float32)

    # ---- Kernel 1: tiny Cin x Cin Gram of x (resident accumulators)
    k1_cost = pl.CostEstimate(
        flops=2 * Mp * Cin * Cin + Mp * Cin,
        transcendentals=0,
        bytes_accessed=Cin * Mp * 4 + (Cin + Cin * Cin) * 4)

    s, gram = pl.pallas_call(
        gram_stats_kernel,
        out_shape=(jax.ShapeDtypeStruct((Cin, 1), jnp.float32),
                   jax.ShapeDtypeStruct((Cin, Cin), jnp.float32)),
        grid_spec=pltpu.PrefetchScalarGridSpec(
            num_scalar_prefetch=0,
            grid=grid,
            in_specs=[pl.BlockSpec((Cin, tm), lambda i: (0, i))],
            out_specs=(pl.BlockSpec((Cin, 1), lambda i: (0, 0)),
                       pl.BlockSpec((Cin, Cin), lambda i: (0, 0)))),
        compiler_params=pltpu.CompilerParams(
            dimension_semantics=("arbitrary",),      # resident accumulators
            vmem_limit_bytes=_VMEM_LIMIT),
        cost_estimate=k1_cost,
    )(x_t)

    # ---- tiny O(Cout*Cin) glue: Gram -> BN batch stats -> folded scale/shift
    Mf = jnp.float32(M)
    xbar = s[:, 0] / Mf                                   # per-input-channel mean
    gram_c = gram - Mf * jnp.outer(xbar, xbar)            # centered Gram (stable var)
    t_r = w_flat @ xbar                                   # (R,) per-row mean of y
    q_r = jnp.einsum('rc,cd,rd->r', w_flat, gram_c, w_flat)   # sum_m (w_r . x~_m)^2
    t4 = t_r.reshape(4, Cout)
    q4 = q_r.reshape(4, Cout)
    mean = t4.mean(axis=0)                                # E[y] per channel
    ex2 = (q4 / Mf + t4 * t4).mean(axis=0)                # E[y^2] per channel
    var = jnp.maximum(ex2 - mean * mean, 0.0)             # biased batch variance
    scale = gamma.astype(jnp.float32) * lax.rsqrt(var + EPS)
    shift = beta.astype(jnp.float32) - mean * scale
    scale_rows = jnp.tile(scale, 4)[:, None]              # row r -> channel r % Cout
    shift_rows = jnp.tile(shift, 4)[:, None]
    w_scaled = w_flat * scale_rows                        # fold BN scale into weight

    # ---- Kernel 2 (fused, dominant): o = relu(W_scaled @ x^T + shift)
    k2_cost = pl.CostEstimate(
        flops=2 * Mp * Cin * R + 2 * R * Mp,
        transcendentals=0,
        bytes_accessed=Cin * Mp * 4 + R * Cin * 4 + R * 4 + R * Mp * 4)

    o_t = pl.pallas_call(
        fused_deconv_bn_relu_kernel,
        out_shape=jax.ShapeDtypeStruct((R, Mp), jnp.float32),
        grid_spec=pltpu.PrefetchScalarGridSpec(
            num_scalar_prefetch=0,
            grid=grid,
            in_specs=[pl.BlockSpec((R, Cin), lambda i: (0, 0)),   # invariant weight
                      pl.BlockSpec((R, 1), lambda i: (0, 0)),     # invariant shift
                      pl.BlockSpec((Cin, tm), lambda i: (0, i))],
            out_specs=pl.BlockSpec((R, tm), lambda i: (0, i))),
        compiler_params=pltpu.CompilerParams(
            dimension_semantics=("parallel",),        # no accumulators -> megacore OK
            vmem_limit_bytes=_VMEM_LIMIT),
        cost_estimate=k2_cost,
    )(w_scaled, shift_rows, x_t)

    if Mp != M:            # only hit when M is not a multiple of 128
        o_t = o_t[:, :M]

    # ---- glue: (R, M) rows=(a,b,k), cols=(n,i,j) -> NCHW with 2x2 tap scatter
    z = o_t.reshape(2, 2, Cout, N, H, W)
    z = jnp.transpose(z, (3, 2, 4, 0, 5, 1)).reshape(N, Cout, Hout, Wout)
    return z


# ----------------------------- Pure-JAX reference ---------------------------

def reference(x, weight, gamma, beta):
    N, Cin, H, W = x.shape
    Cout = weight.shape[1]
    # out[n,k,2i+a,2j+b] = sum_c x[n,c,i,j] * W[c,k,a,b]
    y = jnp.einsum('ncij,ckab->nkiajb', x, weight,
                   precision=lax.Precision.HIGHEST).reshape(N, Cout, 2 * H, 2 * W)
    mean = jnp.mean(y, axis=(0, 2, 3), keepdims=True)
    var = jnp.mean((y - mean) ** 2, axis=(0, 2, 3), keepdims=True)
    z = (y - mean) / jnp.sqrt(var + EPS)
    z = z * gamma.reshape(1, -1, 1, 1) + beta.reshape(1, -1, 1, 1)
    return jnp.maximum(z, 0.0)


# --------------------------------- Main --------------------------------------

if __name__ == "__main__":
    key = jax.random.PRNGKey(0)
    k_x, k_w, k_g, k_b = jax.random.split(key, 4)

    N, Cin, Cout, H, W = 2, 4, 8, 16, 16
    x = jax.random.normal(k_x, (N, Cin, H, W), dtype=jnp.float32)
    # ConvTranspose2d weight shape: (in_planes, out_planes, kH, kW)
    weight = 0.1 * jax.random.normal(k_w, (Cin, Cout, 2, 2), dtype=jnp.float32)
    gamma = 1.0 + 0.1 * jax.random.normal(k_g, (Cout,), dtype=jnp.float32)
    beta = 0.1 * jax.random.normal(k_b, (Cout,), dtype=jnp.float32)

    fwd = jax.jit(trans_basic_conv2d)
    out = jax.block_until_ready(fwd(x, weight, gamma, beta))
    ref = jax.block_until_ready(reference(x, weight, gamma, beta))

    assert out.shape == (N, Cout, 2 * H, 2 * W), out.shape
    max_err = float(jnp.max(jnp.abs(out - ref)))
    assert max_err < 5e-2, max_err
    print("KERNEL_OK")
</pallas_src>

<mosaic_0001>
module attributes {stable_mosaic.version = 11 : i64} {
  func.func @gram_stats_kernel(%arg0: i32, %arg1: memref<4x512xf32, #tpu.memory_space<vmem>>, %arg2: memref<4x1xf32, #tpu.memory_space<vmem>>, %arg3: memref<4x4xf32, #tpu.memory_space<vmem>>) attributes {dimension_semantics = [#tpu.dimension_semantics<arbitrary>], iteration_bounds = array<i64: 1>, scalar_prefetch = 0 : i64, scratch_operands = 0 : i64, tpu.core_type = #tpu.core_type<tc>, window_params = [{transform_indices = @transform_0, window_bounds = array<i64: 4, 512>}, {pipeline_mode = #tpu.pipeline_mode<synchronous>, transform_indices = @transform_1, window_bounds = array<i64: 4, 1>}, {pipeline_mode = #tpu.pipeline_mode<synchronous>, transform_indices = @transform_2, window_bounds = array<i64: 4, 4>}]} {
    %c0_i32 = arith.constant 0 : i32
    %0 = arith.cmpi eq, %arg0, %c0_i32 : i32
    %1 = arith.extui %0 : i1 to i32
    %c0_i32_0 = arith.constant 0 : i32
    %2 = arith.cmpi ne, %1, %c0_i32_0 : i32
    scf.if %2 {
      %cst_11 = arith.constant 0.000000e+00 : f32
      %13 = vector.broadcast %cst_11 : f32 to vector<4x1xf32>
      %c0_12 = arith.constant 0 : index
      %c0_13 = arith.constant 0 : index
      %14 = vector.load %arg2[%c0_12, %c0_13] : memref<4x1xf32, #tpu.memory_space<vmem>>, vector<4x1xf32>
      tpu.vector_store %arg2[%c0_12, %c0_13], %13 {strides = array<i32>} : memref<4x1xf32, #tpu.memory_space<vmem>>, vector<4x1xf32>,
      %cst_14 = arith.constant 0.000000e+00 : f32
      %15 = vector.broadcast %cst_14 : f32 to vector<4x4xf32>
      %c0_15 = arith.constant 0 : index
      %c0_16 = arith.constant 0 : index
      %16 = vector.load %arg3[%c0_15, %c0_16] : memref<4x4xf32, #tpu.memory_space<vmem>>, vector<4x4xf32>
      tpu.vector_store %arg3[%c0_15, %c0_16], %15 {strides = array<i32>} : memref<4x4xf32, #tpu.memory_space<vmem>>, vector<4x4xf32>,
    } else {
    }
    %c0 = arith.constant 0 : index
    %c0_1 = arith.constant 0 : index
    %3 = vector.load %arg1[%c0, %c0_1] : memref<4x512xf32, #tpu.memory_space<vmem>>, vector<4x512xf32>
    %c0_2 = arith.constant 0 : index
    %c0_3 = arith.constant 0 : index
    %4 = vector.load %arg2[%c0_2, %c0_3] : memref<4x1xf32, #tpu.memory_space<vmem>>, vector<4x1xf32>
    %cst = arith.constant dense<0.000000e+00> : vector<4xf32>
    %5 = vector.multi_reduction <add>, %3, %cst [1] : vector<4x512xf32> to vector<4xf32>
    %6 = vector.shape_cast %5 : vector<4xf32> to vector<4x1xf32>
    %7 = arith.addf %4, %6 : vector<4x1xf32>
    %c0_4 = arith.constant 0 : index
    %c0_5 = arith.constant 0 : index
    %8 = vector.load %arg2[%c0_4, %c0_5] : memref<4x1xf32, #tpu.memory_space<vmem>>, vector<4x1xf32>
    tpu.vector_store %arg2[%c0_4, %c0_5], %7 {strides = array<i32>} : memref<4x1xf32, #tpu.memory_space<vmem>>, vector<4x1xf32>,
    %c0_6 = arith.constant 0 : index
    %c0_7 = arith.constant 0 : index
    %9 = vector.load %arg3[%c0_6, %c0_7] : memref<4x4xf32, #tpu.memory_space<vmem>>, vector<4x4xf32>
    %cst_8 = arith.constant dense<0.000000e+00> : vector<4x4xf32>
    %10 = tpu.matmul %3, %3, %cst_8 {dimension_numbers = #tpu.dot_dimension_numbers<[1], [1], [0], [0], [0, 0, 1, 0], [], []>} : vector<4x512xf32>, vector<4x512xf32>, vector<4x4xf32> -> vector<4x4xf32>
    %11 = arith.addf %9, %10 : vector<4x4xf32>
    %c0_9 = arith.constant 0 : index
    %c0_10 = arith.constant 0 : index
    %12 = vector.load %arg3[%c0_9, %c0_10] : memref<4x4xf32, #tpu.memory_space<vmem>>, vector<4x4xf32>
    tpu.vector_store %arg3[%c0_9, %c0_10], %11 {strides = array<i32>} : memref<4x4xf32, #tpu.memory_space<vmem>>, vector<4x4xf32>,
    return
  }
  func.func @transform_0(%arg0: i32) -> (i32, i32) {
    %c0_i32 = arith.constant 0 : i32
    %c0_i32_0 = arith.constant 0 : i32
    return %c0_i32, %arg0 : i32, i32
  }
  func.func @transform_1(%arg0: i32) -> (i32, i32) {
    %c0_i32 = arith.constant 0 : i32
    %c0_i32_0 = arith.constant 0 : i32
    %c0_i32_1 = arith.constant 0 : i32
    return %c0_i32, %c0_i32_0 : i32, i32
  }
  func.func @transform_2(%arg0: i32) -> (i32, i32) {
    %c0_i32 = arith.constant 0 : i32
    %c0_i32_0 = arith.constant 0 : i32
    %c0_i32_1 = arith.constant 0 : i32
    return %c0_i32, %c0_i32_0 : i32, i32
  }
}

module attributes {stable_mosaic.version = 11 : i64} {
  func.func @fused_deconv_bn_relu_kernel(%arg0: i32, %arg1: memref<32x4xf32, #tpu.memory_space<vmem>>, %arg2: memref<32x1xf32, #tpu.memory_space<vmem>>, %arg3: memref<4x512xf32, #tpu.memory_space<vmem>>, %arg4: memref<32x512xf32, #tpu.memory_space<vmem>>) attributes {dimension_semantics = [#tpu.dimension_semantics<parallel>], iteration_bounds = array<i64: 1>, scalar_prefetch = 0 : i64, scratch_operands = 0 : i64, tpu.core_type = #tpu.core_type<tc>, window_params = [{pipeline_mode = #tpu.pipeline_mode<synchronous>, transform_indices = @transform_0, window_bounds = array<i64: 32, 4>}, {pipeline_mode = #tpu.pipeline_mode<synchronous>, transform_indices = @transform_1, window_bounds = array<i64: 32, 1>}, {transform_indices = @transform_2, window_bounds = array<i64: 4, 512>}, {transform_indices = @transform_3, window_bounds = array<i64: 32, 512>}]} {
    %c0 = arith.constant 0 : index
    %c0_0 = arith.constant 0 : index
    %0 = vector.load %arg1[%c0, %c0_0] : memref<32x4xf32, #tpu.memory_space<vmem>>, vector<32x4xf32>
    %c0_1 = arith.constant 0 : index
    %c0_2 = arith.constant 0 : index
    %1 = vector.load %arg3[%c0_1, %c0_2] : memref<4x512xf32, #tpu.memory_space<vmem>>, vector<4x512xf32>
    %cst = arith.constant dense<0.000000e+00> : vector<32x512xf32>
    %2 = tpu.matmul %0, %1, %cst {dimension_numbers = #tpu.dot_dimension_numbers<[1], [0], [0], [1], [0, 0, 1, 1], [], []>} : vector<32x4xf32>, vector<4x512xf32>, vector<32x512xf32> -> vector<32x512xf32>
    %c0_3 = arith.constant 0 : index
    %c0_4 = arith.constant 0 : index
    %3 = vector.load %arg2[%c0_3, %c0_4] : memref<32x1xf32, #tpu.memory_space<vmem>>, vector<32x1xf32>
    %4 = vector.broadcast %3 : vector<32x1xf32> to vector<32x512xf32>
    %5 = arith.addf %2, %4 : vector<32x512xf32>
    %cst_5 = arith.constant 0.000000e+00 : f32
    %6 = vector.broadcast %cst_5 : f32 to vector<32x512xf32>
    %7 = arith.maximumf %5, %6 : vector<32x512xf32>
    %c0_6 = arith.constant 0 : index
    %c0_7 = arith.constant 0 : index
    %8 = vector.load %arg4[%c0_6, %c0_7] : memref<32x512xf32, #tpu.memory_space<vmem>>, vector<32x512xf32>
    tpu.vector_store %arg4[%c0_6, %c0_7], %7 {strides = array<i32>} : memref<32x512xf32, #tpu.memory_space<vmem>>, vector<32x512xf32>,
    return
  }
  func.func @transform_0(%arg0: i32) -> (i32, i32) {
    %c0_i32 = arith.constant 0 : i32
    %c0_i32_0 = arith.constant 0 : i32
    %c0_i32_1 = arith.constant 0 : i32
    return %c0_i32, %c0_i32_0 : i32, i32
  }
  func.func @transform_1(%arg0: i32) -> (i32, i32) {
    %c0_i32 = arith.constant 0 : i32
    %c0_i32_0 = arith.constant 0 : i32
    %c0_i32_1 = arith.constant 0 : i32
    return %c0_i32, %c0_i32_0 : i32, i32
  }
  func.func @transform_2(%arg0: i32) -> (i32, i32) {
    %c0_i32 = arith.constant 0 : i32
    %c0_i32_0 = arith.constant 0 : i32
    return %c0_i32, %arg0 : i32, i32
  }
  func.func @transform_3(%arg0: i32) -> (i32, i32) {
    %c0_i32 = arith.constant 0 : i32
    %c0_i32_0 = arith.constant 0 : i32
    return %c0_i32, %arg0 : i32, i32
  }
}

</mosaic_0001>

<llo_original>
// kernel: mul.0
$region0: #{mul.0}
  #allocation0 [shape = 's32[1]{0}', space=sflag, size = 0x4, scoped, tag = 'scoped memory for mul.0']
  %s0 = inlined_call_operand.vmem [shape: f32[2,2,8], index: 0, kind: input, shape index: {}, may-alias: {0,1}]
  %s1 = inlined_call_operand.vmem [shape: f32[2,2,8], index: 1, kind: input, shape index: {}, may-alias: {0,1}]
  %s2 = inlined_call_operand.vmem [shape: f32[2,2,8], index: 2, kind: output, shape index: {}]
  %v3 = vld [vmem:[%s0] sm:$0x3]
  %v4 = vld [vmem:[%s1] sm:$0x3]
  %5 = xla_tuple %v3, %v4
  %6 = xla_tuple %5
  %v7 = vmul.f32 %v3, %v4
  %8 = xla_tuple %v7
  %9 = vst [vmem:[%s2] sm:$0x3] %v7
  %s10 = scalar_lea.vmem %s0, 2
  %v11 = vld [vmem:[%s10] sm:$0x3]
  %s12 = scalar_lea.vmem %s1, 2
  %v13 = vld [vmem:[%s12] sm:$0x3]
  %14 = xla_tuple %v11, %v13
  %15 = xla_tuple %14
  %v16 = vmul.f32 %v11, %v13
  %17 = xla_tuple %v16
  %s18 = scalar_lea.vmem %s2, 2
  %19 = vst [vmem:[%s18] sm:$0x3] %v16

// kernel: tile.18
$region0: #{tile.18}
  #allocation0 [shape = 's32[1]{0}', space=sflag, size = 0x4, scoped, tag = 'scoped memory for tile.18']
  %s0 = inlined_call_operand.vmem [shape: f32[8], index: 0, kind: input, shape index: {}]
  %s1 = inlined_call_operand.vmem [shape: f32[4,8], index: 1, kind: output, shape index: {}]
  // Predicated region
  $region2: #{tile.18} parent=0 // pred_check
    _
  $region3: #{tile.18} parent=0 // pred_check_branch
    %3 = sbr.rel (0) target = $region5
  $region4: #{tile.18} parent=0 // pred_region
    _
  $region5: #{tile.18} parent=0 // pred_fallthru
    _
  %v4 = vld [vmem:[%s0] ss:$0 sm:$0xff]
  %5 = vst [vmem:[%s1] sm:$0xf] %v4

// kernel: mul.29
$region0: #{mul.29}
  %s0 = inlined_call_operand.vmem [shape: f32[4,8], index: 0, kind: input, shape index: {}]
  %s1 = inlined_call_operand.vmem [shape: f32[32], index: 1, kind: output, shape index: {}]
  $region1: #{mul.29} parent=0
    #allocation0 [shape = 'u8[4096]{0}', space=vmem, size = 0x1000, scoped, tag = 'scoped mem for output reshape']
    #allocation1 [shape = 'u8[4096]{0}', space=vmem, size = 0x1000, scoped, tag = 'scoped mem for input reshape']
    %s3 = sshllo.u32 0, 4
    %v4 = vld [vmem:[%s0] sm:%s3]
    %5 = vst [vmem:[#allocation1] sm:%s3] %v4
    %v6 = vld [vmem:[#allocation1] sm:$0x1]
    %vm7 = vcmask 64512
    %8 = vst.msk [vmem:[#allocation0] sm:$0x1] %vm7, %v6
    %s9 = scalar_lea.vmem [#allocation1], 3
    %v10 = vld [vmem:[%s9] sm:$0x1]
    %11 = vrot.lane.b32.xlu0 %v10, 24
    %v12 = vpop.permute.xlu0 %11
    %vm13 = vcmask 261312
    %14 = vst.msk [vmem:[#allocation0] sm:$0x1] %vm13, %v12
    %s15 = scalar_lea.vmem [#allocation1], 2
    %v16 = vld [vmem:[%s15] sm:$0x1]
    %17 = vrot.lane.b32.xlu0 %v16, 16
    %v18 = vpop.permute.xlu0 %17
    %vm19 = vcmask 195712
    %20 = vst.msk [vmem:[#allocation0] sm:$0x1] %vm19, %v18
    %s21 = scalar_lea.vmem [#allocation1], 1
    %v22 = vld [vmem:[%s21] sm:$0x1]
    %23 = vrot.lane.b32.xlu0 %v22, 8
    %v24 = vpop.permute.xlu0 %23
    %vm25 = vcmask 130112
    %26 = vst.msk [vmem:[#allocation0] sm:$0x1] %vm25, %v24
    %s28 = sshllo.u32 0, 1
    %v30 = vld [vmem:[#allocation0] sm:%s28]
    %s31 = sshllo.u32 0, 1
    %32 = vst [vmem:[%s1] sm:%s31] %v30

// kernel: tile.0
$region0: #{tile.0}
  %s0 = inlined_call_operand.vmem [shape: f32[4,8], index: 0, kind: input, shape index: {}]
  %s1 = inlined_call_operand.vmem [shape: f32[32,1], index: 1, kind: output, shape index: {}]
  $region1: #{tile.0} parent=0
    #allocation0 [shape = 'u8[4096]{0}', space=vmem, size = 0x1000, scoped, tag = 'scoped mem for input reshape']
    %s3 = sshllo.u32 0, 4
    %v4 = vld [vmem:[%s0] sm:%s3]
    %5 = vst [vmem:[#allocation0] sm:%s3] %v4
    %v6 = vld [vmem:[#allocation0] sm:$0xf]
    %vm7 = vcmask 7168
    %8 = vst.msk [vmem:[%s1] ss:$8 sm:$0xf] %vm7, %v6
    %v9 = vld [vmem:[#allocation0] sm:$0xf]
    %10 = vrot.lane.b32.xlu0 %v9, 127
    %v11 = vpop.permute.xlu0 %10
    %vm12 = vcmask 7168
    %s13 = scalar_lea.vmem %s1, 1
    %14 = vst.msk [vmem:[%s13] ss:$8 sm:$0xf] %vm12, %v11
    %v15 = vld [vmem:[#allocation0] sm:$0xf]
    %16 = vrot.lane.b32.xlu0 %v15, 126
    %v17 = vpop.permute.xlu0 %16
    %vm18 = vcmask 7168
    %s19 = scalar_lea.vmem %s1, 2
    %20 = vst.msk [vmem:[%s19] ss:$8 sm:$0xf] %vm18, %v17
    %v21 = vld [vmem:[#allocation0] sm:$0xf]
    %22 = vrot.lane.b32.xlu0 %v21, 125
    %v23 = vpop.permute.xlu0 %22
    %vm24 = vcmask 7168
    %s25 = scalar_lea.vmem %s1, 3
    %26 = vst.msk [vmem:[%s25] ss:$8 sm:$0xf] %vm24, %v23
    %v27 = vld [vmem:[#allocation0] sm:$0xf]
    %28 = vrot.lane.b32.xlu0 %v27, 124
    %v29 = vpop.permute.xlu0 %28
    %vm30 = vcmask 7168
    %s31 = scalar_lea.vmem %s1, 4
    %32 = vst.msk [vmem:[%s31] ss:$8 sm:$0xf] %vm30, %v29
    %v33 = vld [vmem:[#allocation0] sm:$0xf]
    %34 = vrot.lane.b32.xlu0 %v33, 123
    %v35 = vpop.permute.xlu0 %34
    %vm36 = vcmask 7168
    %s37 = scalar_lea.vmem %s1, 5
    %38 = vst.msk [vmem:[%s37] ss:$8 sm:$0xf] %vm36, %v35
    %v39 = vld [vmem:[#allocation0] sm:$0xf]
    %40 = vrot.lane.b32.xlu0 %v39, 122
    %v41 = vpop.permute.xlu0 %40
    %vm42 = vcmask 7168
    %s43 = scalar_lea.vmem %s1, 6
    %44 = vst.msk [vmem:[%s43] ss:$8 sm:$0xf] %vm42, %v41
    %v45 = vld [vmem:[#allocation0] sm:$0xf]
    %46 = vrot.lane.b32.xlu0 %v45, 121
    %v47 = vpop.permute.xlu0 %46
    %vm48 = vcmask 7168
    %s49 = scalar_lea.vmem %s1, 7
    %50 = vst.msk [vmem:[%s49] ss:$8 sm:$0xf] %vm48, %v47

// kernel: trans_basic_conv2d.2
$region0: #{trans_basic_conv2d.2}
  #allocation0 [shape = 'u32[]', space=smem, size = 0x4, offset = 0x4, fixed_abs, tag = 'smem constant byte address 0x4 - core index']
  #allocation1 [shape = 'u32[144,128]{1,0:T(1,128)}', space=vmem, size = 0x12000, scoped, tag = 'internal scratch']
  %s0 = inlined_call_operand.vmem [shape: f32[4,512], index: 0, kind: input, shape index: {}]
  %s1 = inlined_call_operand.vmem [shape: f32[4,1], index: 1, kind: output, shape index: {0}]
  %s2 = inlined_call_operand.vmem [shape: f32[4,4], index: 2, kind: output, shape index: {1}]
  %3 = xla_tuple %s1, %s2
  %s4 = sld [smem:[#allocation0]]
  $region26: #{trans_basic_conv2d.2} parent=0
    _
  %s6 = ssub.s32 1, %s4
  %s7 = scalar_select 0, %s6, %s4
  // Predicated region
  $region2: #{trans_basic_conv2d.2} parent=0 // pred_check
    _
  $region3: #{trans_basic_conv2d.2} parent=0 // pred_check_branch
    %9 = sbr.rel (0) target = $region5
  $region4: #{trans_basic_conv2d.2} parent=0 // pred_region
    _
  $region5: #{trans_basic_conv2d.2} parent=0 // pred_fallthru
    _
  %p10 = scmp.eq.s32.totalorder 0, 0
  // Predicated region
  $region6: #{trans_basic_conv2d.2} parent=0 // pred_check
    %p11 = pneg %p10
  $region7: #{trans_basic_conv2d.2} parent=0 // pred_check_branch
    %13 = sbr.rel (%p11) target = $region9
  $region8: #{trans_basic_conv2d.2} parent=0 // pred_region
    %vm14 = vcmask 3072
    %15 = vst.msk [vmem:[%s1] sm:$0xf] %vm14, 0.0
    %vm16 = vcmask 27648
    %17 = vst.msk [vmem:[%s2] sm:$0xf] %vm16, 0.0
  $region9: #{trans_basic_conv2d.2} parent=0 // pred_fallthru
    _
  %v18 = vld [vmem:[%s0] sm:$0xff]
  %v19 = vld [vmem:[%s0 + $0x8] sm:$0xff]
  %v20 = vld [vmem:[%s1] sm:$0xf]
  %v23 = vcombine.high %v18, %v18
  %v24 = vcombine.high %v19, %v19
  %vm27 = vcmask 1043456
  %v28 = vsel %vm27, %v18, 0.0
  %v29 = vsel %vm27, %v23, 0.0
  %v30 = vadd.f32 %v28, %v29
  %v31 = vsel %vm27, %v19, 0.0
  %v32 = vadd.f32 %v30, %v31
  %v33 = vsel %vm27, %v24, 0.0
  %v34 = vadd.f32 %v32, %v33
  %35 = vadd.xlane.f32.xlu0 %v34
  %v36 = vpop.xlane.xlu0 %35
  %v37 = vadd.f32 %v20, %v36
  %vm38 = vcmask 3072
  %39 = vst.msk [vmem:[%s1] sm:$0xf] %vm38, %v37
  %v40 = vld [vmem:[%s2] sm:$0xf]
  %41 = vmatprep.subr.mxu0 %v23
  %42 = vmatpush1.xpose.msra.mxu0 %v18
  %43 = vmatprep.subr.mxu0 0.0
  %44 = vmatpush1.xpose.msra.mxu0 0.0
  %45 = vmatprep.subr.mxu0 0.0
  %46 = vmatpush1.xpose.msra.mxu0 0.0
  %47 = vmatprep.subr.mxu0 0.0
  %48 = vmatpush1.xpose.msra.mxu0 0.0
  %49 = vmatprep.subr.mxu0 0.0
  %50 = vmatpush1.xpose.msra.mxu0 0.0
  %51 = vmatprep.subr.mxu0 0.0
  %52 = vmatpush1.xpose.msra.mxu0 0.0
  %53 = vmatprep.subr.mxu0 0.0
  %54 = vmatpush1.xpose.msra.mxu0 0.0
  %55 = vmatprep.subr.mxu0 0.0
  %56 = vmatpush1.xpose.msra.mxu0 0.0
  %57 = vmatprep.subr.mxu0 0.0
  %58 = vmatpush1.xpose.msra.mxu0 0.0
  %59 = vmatprep.subr.mxu0 0.0
  %60 = vmatpush1.xpose.msra.mxu0 0.0
  %61 = vmatprep.subr.mxu0 0.0
  %62 = vmatpush1.xpose.msra.mxu0 0.0
  %63 = vmatprep.subr.mxu0 0.0
  %64 = vmatpush1.xpose.msra.mxu0 0.0
  %65 = vmatprep.subr.mxu0 0.0
  %66 = vmatpush1.xpose.msra.mxu0 0.0
  %67 = vmatprep.subr.mxu0 0.0
  %68 = vmatpush1.xpose.msra.mxu0 0.0
  %69 = vmatprep.subr.mxu0 0.0
  %70 = vmatpush1.xpose.msra.mxu0 0.0
  %71 = vmatprep.subr.mxu0 0.0
  %72 = vmatpush1.xpose.msra.mxu0 0.0
  %73 = vmatprep.subr.mxu0 0.0
  %74 = vmatpush1.xpose.msra.mxu0 0.0
  %75 = vmatprep.subr.mxu0 0.0
  %76 = vmatpush1.xpose.msra.mxu0 0.0
  %77 = vmatprep.subr.mxu0 0.0
  %78 = vmatpush1.xpose.msra.mxu0 0.0
  %79 = vmatprep.subr.mxu0 0.0
  %80 = vmatpush1.xpose.msra.mxu0 0.0
  %81 = vmatprep.subr.mxu0 0.0
  %82 = vmatpush1.xpose.msra.mxu0 0.0
  %83 = vmatprep.subr.mxu0 0.0
  %84 = vmatpush1.xpose.msra.mxu0 0.0
  %85 = vmatprep.subr.mxu0 0.0
  %86 = vmatpush1.xpose.msra.mxu0 0.0
  %87 = vmatprep.subr.mxu0 0.0
  %88 = vmatpush1.xpose.msra.mxu0 0.0
  %89 = vmatprep.subr.mxu0 0.0
  %90 = vmatpush1.xpose.msra.mxu0 0.0
  %91 = vmatprep.subr.mxu0 0.0
  %92 = vmatpush1.xpose.msra.mxu0 0.0
  %93 = vmatprep.subr.mxu0 0.0
  %94 = vmatpush1.xpose.msra.mxu0 0.0
  %95 = vmatprep.subr.mxu0 0.0
  %96 = vmatpush1.xpose.msra.mxu0 0.0
  %97 = vmatprep.subr.mxu0 0.0
  %98 = vmatpush1.xpose.msra.mxu0 0.0
  %99 = vmatprep.subr.mxu0 0.0
  %100 = vmatpush1.xpose.msra.mxu0 0.0
  %101 = vmatprep.subr.mxu0 0.0
  %102 = vmatpush1.xpose.msra.mxu0 0.0
  %103 = vmatprep.subr.mxu0 0.0
  %104 = vmatpush1.xpose.msra.mxu0 0.0
  %105 = vmatprep.mubr.f32.mxu0 %v23
  %106 = vmatmul.mubr.f32.gmra.mrb[0].mxu0 %v18
  %v107 = vpop.f32.mrb[0].mxu0
  %v108 = vadd.f32 0.0, %v107
  %v109 = vpop.f32.mrb[0].mxu0
  %110 = vdwg.mxu0
  %111 = vmatprep.subr.mxu0 %v24
  %112 = vmatpush1.xpose.msra.mxu0 %v19
  %113 = vmatprep.subr.mxu0 0.0
  %114 = vmatpush1.xpose.msra.mxu0 0.0
  %115 = vmatprep.subr.mxu0 0.0
  %116 = vmatpush1.xpose.msra.mxu0 0.0
  %117 = vmatprep.subr.mxu0 0.0
  %118 = vmatpush1.xpose.msra.mxu0 0.0
  %119 = vmatprep.subr.mxu0 0.0
  %120 = vmatpush1.xpose.msra.mxu0 0.0
  %121 = vmatprep.subr.mxu0 0.0
  %122 = vmatpush1.xpose.msra.mxu0 0.0
  %123 = vmatprep.subr.mxu0 0.0
  %124 = vmatpush1.xpose.msra.mxu0 0.0
  %125 = vmatprep.subr.mxu0 0.0
  %126 = vmatpush1.xpose.msra.mxu0 0.0
  %127 = vmatprep.subr.mxu0 0.0
  %128 = vmatpush1.xpose.msra.mxu0 0.0
  %129 = vmatprep.subr.mxu0 0.0
  %130 = vmatpush1.xpose.msra.mxu0 0.0
  %131 = vmatprep.subr.mxu0 0.0
  %132 = vmatpush1.xpose.msra.mxu0 0.0
  %133 = vmatprep.subr.mxu0 0.0
  %134 = vmatpush1.xpose.msra.mxu0 0.0
  %135 = vmatprep.subr.mxu0 0.0
  %136 = vmatpush1.xpose.msra.mxu0 0.0
  %137 = vmatprep.subr.mxu0 0.0
  %138 = vmatpush1.xpose.msra.mxu0 0.0
  %139 = vmatprep.subr.mxu0 0.0
  %140 = vmatpush1.xpose.msra.mxu0 0.0
  %141 = vmatprep.subr.mxu0 0.0
  %142 = vmatpush1.xpose.msra.mxu0 0.0
  %143 = vmatprep.subr.mxu0 0.0
  %144 = vmatpush1.xpose.msra.mxu0 0.0
  %145 = vmatprep.subr.mxu0 0.0
  %146 = vmatpush1.xpose.msra.mxu0 0.0
  %147 = vmatprep.subr.mxu0 0.0
  %148 = vmatpush1.xpose.msra.mxu0 0.0
  %149 = vmatprep.subr.mxu0 0.0
  %150 = vmatpush1.xpose.msra.mxu0 0.0
  %151 = vmatprep.subr.mxu0 0.0
  %152 = vmatpush1.xpose.msra.mxu0 0.0
  %153 = vmatprep.subr.mxu0 0.0
  %154 = vmatpush1.xpose.msra.mxu0 0.0
  %155 = vmatprep.subr.mxu0 0.0
  %156 = vmatpush1.xpose.msra.mxu0 0.0
  %157 = vmatprep.subr.mxu0 0.0
  %158 = vmatpush1.xpose.msra.mxu0 0.0
  %159 = vmatprep.subr.mxu0 0.0
  %160 = vmatpush1.xpose.msra.mxu0 0.0
  %161 = vmatprep.subr.mxu0 0.0
  %162 = vmatpush1.xpose.msra.mxu0 0.0
  %163 = vmatprep.subr.mxu0 0.0
  %164 = vmatpush1.xpose.msra.mxu0 0.0
  %165 = vmatprep.subr.mxu0 0.0
  %166 = vmatpush1.xpose.msra.mxu0 0.0
  %167 = vmatprep.subr.mxu0 0.0
  %168 = vmatpush1.xpose.msra.mxu0 0.0
  %169 = vmatprep.subr.mxu0 0.0
  %170 = vmatpush1.xpose.msra.mxu0 0.0
  %171 = vmatprep.subr.mxu0 0.0
  %172 = vmatpush1.xpose.msra.mxu0 0.0
  %173 = vmatprep.subr.mxu0 0.0
  %174 = vmatpush1.xpose.msra.mxu0 0.0
  %175 = vmatprep.mubr.f32.mxu0 %v24
  %176 = vmatmul.mubr.f32.gmra.mrb[0].mxu0 %v19
  %v177 = vpop.f32.mrb[0].mxu0
  %v178 = vadd.f32 %v108, %v177
  %v179 = vpop.f32.mrb[0].mxu0
  %180 = vdwg.mxu0
  %v181 = vadd.f32 %v40, %v178
  %vm182 = vcmask 27648
  %183 = vst.msk [vmem:[%s2] sm:$0xf] %vm182, %v181
  // Predicated region
  $region10: #{trans_basic_conv2d.2} parent=0 // pred_check
    _
  $region11: #{trans_basic_conv2d.2} parent=0 // pred_check_branch
    %185 = sbr.rel (0) target = $region13
  $region12: #{trans_basic_conv2d.2} parent=0 // pred_region
    _
  $region13: #{trans_basic_conv2d.2} parent=0 // pred_fallthru
    _
  // Predicated region
  $region14: #{trans_basic_conv2d.2} parent=0 // pred_check
    _
  $region15: #{trans_basic_conv2d.2} parent=0 // pred_check_branch
    %187 = sbr.rel (0) target = $region17
  $region16: #{trans_basic_conv2d.2} parent=0 // pred_region
    _
  $region17: #{trans_basic_conv2d.2} parent=0 // pred_fallthru
    _
  // Predicated region
  $region18: #{trans_basic_conv2d.2} parent=0 // pred_check
    _
  $region19: #{trans_basic_conv2d.2} parent=0 // pred_check_branch
    %189 = sbr.rel (0) target = $region21
  $region20: #{trans_basic_conv2d.2} parent=0 // pred_region
    _
  $region21: #{trans_basic_conv2d.2} parent=0 // pred_fallthru
    _
  // Predicated region
  $region22: #{trans_basic_conv2d.2} parent=0 // pred_check
    _
  $region23: #{trans_basic_conv2d.2} parent=0 // pred_check_branch
    %191 = sbr.rel (0) target = $region25
  $region24: #{trans_basic_conv2d.2} parent=0 // pred_region
    _
  $region25: #{trans_basic_conv2d.2} parent=0 // pred_fallthru
    _

// kernel: trans_basic_conv2d.3
$region0: #{trans_basic_conv2d.3}
  #allocation0 [shape = 'u32[]', space=smem, size = 0x4, offset = 0x4, fixed_abs, tag = 'smem constant byte address 0x4 - core index']
  #allocation1 [shape = 'u32[144,128]{1,0:T(1,128)}', space=vmem, size = 0x12000, scoped, tag = 'internal scratch']
  %s0 = inlined_call_operand.vmem [shape: f32[32,4], index: 0, kind: input, shape index: {}]
  %s1 = inlined_call_operand.vmem [shape: f32[32,1], index: 1, kind: input, shape index: {}]
  %s2 = inlined_call_operand.vmem [shape: f32[4,512], index: 2, kind: input, shape index: {}]
  %s3 = inlined_call_operand.vmem [shape: f32[32,512], index: 3, kind: output, shape index: {}]
  %s4 = sld [smem:[#allocation0]]
  $region22: #{trans_basic_conv2d.3} parent=0
    _
  %s6 = ssub.s32 1, %s4
  %s7 = scalar_select 0, %s6, %s4
  // Predicated region
  $region2: #{trans_basic_conv2d.3} parent=0 // pred_check
    _
  $region3: #{trans_basic_conv2d.3} parent=0 // pred_check_branch
    %9 = sbr.rel (0) target = $region5
  $region4: #{trans_basic_conv2d.3} parent=0 // pred_region
    _
  $region5: #{trans_basic_conv2d.3} parent=0 // pred_fallthru
    _
  // Predicated region
  $region6: #{trans_basic_conv2d.3} parent=0 // pred_check
    _
  $region7: #{trans_basic_conv2d.3} parent=0 // pred_check_branch
    %11 = sbr.rel (0) target = $region9
  $region8: #{trans_basic_conv2d.3} parent=0 // pred_region
    _
  $region9: #{trans_basic_conv2d.3} parent=0 // pred_fallthru
    _
  // Predicated region
  $region10: #{trans_basic_conv2d.3} parent=0 // pred_check
    _
  $region11: #{trans_basic_conv2d.3} parent=0 // pred_check_branch
    %13 = sbr.rel (0) target = $region13
  $region12: #{trans_basic_conv2d.3} parent=0 // pred_region
    _
  $region13: #{trans_basic_conv2d.3} parent=0 // pred_fallthru
    _
  %v14 = vld [vmem:[%s0] sm:$0xff]
  %v15 = vld [vmem:[%s0 + $0x8] sm:$0xff]
  %v16 = vld [vmem:[%s0 + $0x10] sm:$0xff]
  %v17 = vld [vmem:[%s0 + $0x18] sm:$0xff]
  %v18 = vld [vmem:[%s2] sm:$0xff]
  %v19 = vld [vmem:[%s2 + $0x8] sm:$0xff]
  %v20 = vld [vmem:[%s1] sm:$0xff]
  %v21 = vld [vmem:[%s1 + $0x8] sm:$0xff]
  %v22 = vld [vmem:[%s1 + $0x10] sm:$0xff]
  %v23 = vld [vmem:[%s1 + $0x18] sm:$0xff]
  %25 = vset.pattern.permute.xlu0 0
  %26 = vperm.xlu0 %25, %v20
  %v27 = vpop.permute.xlu0 %26
  %30 = vset.pattern.permute.xlu0 0
  %31 = vperm.xlu0 %30, %v21
  %v32 = vpop.permute.xlu0 %31
  %35 = vset.pattern.permute.xlu0 0
  %36 = vperm.xlu0 %35, %v22
  %v37 = vpop.permute.xlu0 %36
  %40 = vset.pattern.permute.xlu0 0
  %41 = vperm.xlu0 %40, %v23
  %v42 = vpop.permute.xlu0 %41
  %v46 = vcombine.high %v18, %v18
  %v47 = vcombine.high %v19, %v19
  %vm48 = vcmask 31744
  %v50 = vsel %vm48, %v14, 0
  %v53 = vsel %vm48, %v15, 0
  %v56 = vsel %vm48, %v16, 0
  %v59 = vsel %vm48, %v17, 0
  %vm61 = vcmask 1043456
  %v62 = vsel %vm61, %v18, 0
  %v64 = vsel %vm61, %v46, 0
  %v66 = vsel %vm61, %v19, 0
  %v68 = vsel %vm61, %v47, 0
  %70 = vmatprep.subr.mxu0 %v64
  %71 = vmatpush1.msra.mxu0 %v62
  %72 = vmatprep.subr.mxu0 0.0
  %73 = vmatpush1.msra.mxu0 0.0
  %74 = vmatprep.subr.mxu0 0.0
  %75 = vmatpush1.msra.mxu0 0.0
  %76 = vmatprep.subr.mxu0 0.0
  %77 = vmatpush1.msra.mxu0 0.0
  %78 = vmatprep.subr.mxu0 0.0
  %79 = vmatpush1.msra.mxu0 0.0
  %80 = vmatprep.subr.mxu0 0.0
  %81 = vmatpush1.msra.mxu0 0.0
  %82 = vmatprep.subr.mxu0 0.0
  %83 = vmatpush1.msra.mxu0 0.0
  %84 = vmatprep.subr.mxu0 0.0
  %85 = vmatpush1.msra.mxu0 0.0
  %86 = vmatprep.subr.mxu0 0.0
  %87 = vmatpush1.msra.mxu0 0.0
  %88 = vmatprep.subr.mxu0 0.0
  %89 = vmatpush1.msra.mxu0 0.0
  %90 = vmatprep.subr.mxu0 0.0
  %91 = vmatpush1.msra.mxu0 0.0
  %92 = vmatprep.subr.mxu0 0.0
  %93 = vmatpush1.msra.mxu0 0.0
  %94 = vmatprep.subr.mxu0 0.0
  %95 = vmatpush1.msra.mxu0 0.0
  %96 = vmatprep.subr.mxu0 0.0
  %97 = vmatpush1.msra.mxu0 0.0
  %98 = vmatprep.subr.mxu0 0.0
  %99 = vmatpush1.msra.mxu0 0.0
  %100 = vmatprep.subr.mxu0 0.0
  %101 = vmatpush1.msra.mxu0 0.0
  %102 = vmatprep.subr.mxu0 0.0
  %103 = vmatpush1.msra.mxu0 0.0
  %104 = vmatprep.subr.mxu0 0.0
  %105 = vmatpush1.msra.mxu0 0.0
  %106 = vmatprep.subr.mxu0 0.0
  %107 = vmatpush1.msra.mxu0 0.0
  %108 = vmatprep.subr.mxu0 0.0
  %109 = vmatpush1.msra.mxu0 0.0
  %110 = vmatprep.subr.mxu0 0.0
  %111 = vmatpush1.msra.mxu0 0.0
  %112 = vmatprep.subr.mxu0 0.0
  %113 = vmatpush1.msra.mxu0 0.0
  %114 = vmatprep.subr.mxu0 0.0
  %115 = vmatpush1.msra.mxu0 0.0
  %116 = vmatprep.subr.mxu0 0.0
  %117 = vmatpush1.msra.mxu0 0.0
  %118 = vmatprep.subr.mxu0 0.0
  %119 = vmatpush1.msra.mxu0 0.0
  %120 = vmatprep.subr.mxu0 0.0
  %121 = vmatpush1.msra.mxu0 0.0
  %122 = vmatprep.subr.mxu0 0.0
  %123 = vmatpush1.msra.mxu0 0.0
  %124 = vmatprep.subr.mxu0 0.0
  %125 = vmatpush1.msra.mxu0 0.0
  %126 = vmatprep.subr.mxu0 0.0
  %127 = vmatpush1.msra.mxu0 0.0
  %128 = vmatprep.subr.mxu0 0.0
  %129 = vmatpush1.msra.mxu0 0.0
  %130 = vmatprep.subr.mxu0 0.0
  %131 = vmatpush1.msra.mxu0 0.0
  %132 = vmatprep.subr.mxu0 0.0
  %133 = vmatpush1.msra.mxu0 0.0
  %134 = vmatprep.mubr.f32.mxu0 0.0
  %135 = vmatmul.mubr.f32.gmra.mrb[0].mxu0 %v50
  %v136 = vpop.f32.mrb[0].mxu0
  %v137 = vadd.f32 %v27, %v136
  %v138 = vpop.f32.mrb[0].mxu0
  %v139 = vadd.f32 %v27, %v138
  %140 = vmatprep.mubr.f32.mxu0 0.0
  %141 = vmatmul.mubr.f32.gmra.mrb[0].mxu0 %v53
  %v142 = vpop.f32.mrb[0].mxu0
  %v143 = vadd.f32 %v32, %v142
  %v144 = vpop.f32.mrb[0].mxu0
  %v145 = vadd.f32 %v32, %v144
  %146 = vmatprep.mubr.f32.mxu0 0.0
  %147 = vmatmul.mubr.f32.gmra.mrb[0].mxu0 %v56
  %v148 = vpop.f32.mrb[0].mxu0
  %v149 = vadd.f32 %v37, %v148
  %v150 = vpop.f32.mrb[0].mxu0
  %v151 = vadd.f32 %v37, %v150
  %152 = vmatprep.mubr.f32.mxu0 0.0
  %153 = vmatmul.mubr.f32.gmra.mrb[0].mxu0 %v59
  %v154 = vpop.f32.mrb[0].mxu0
  %v155 = vadd.f32 %v42, %v154
  %v156 = vpop.f32.mrb[0].mxu0
  %v157 = vadd.f32 %v42, %v156
  %158 = vdwg.mxu0
  %159 = vmatprep.subr.mxu0 %v68
  %160 = vmatpush1.msra.mxu0 %v66
  %161 = vmatprep.subr.mxu0 0.0
  %162 = vmatpush1.msra.mxu0 0.0
  %163 = vmatprep.subr.mxu0 0.0
  %164 = vmatpush1.msra.mxu0 0.0
  %165 = vmatprep.subr.mxu0 0.0
  %166 = vmatpush1.msra.mxu0 0.0
  %167 = vmatprep.subr.mxu0 0.0
  %168 = vmatpush1.msra.mxu0 0.0
  %169 = vmatprep.subr.mxu0 0.0
  %170 = vmatpush1.msra.mxu0 0.0
  %171 = vmatprep.subr.mxu0 0.0
  %172 = vmatpush1.msra.mxu0 0.0
  %173 = vmatprep.subr.mxu0 0.0
  %174 = vmatpush1.msra.mxu0 0.0
  %175 = vmatprep.subr.mxu0 0.0
  %176 = vmatpush1.msra.mxu0 0.0
  %177 = vmatprep.subr.mxu0 0.0
  %178 = vmatpush1.msra.mxu0 0.0
  %179 = vmatprep.subr.mxu0 0.0
  %180 = vmatpush1.msra.mxu0 0.0
  %181 = vmatprep.subr.mxu0 0.0
  %182 = vmatpush1.msra.mxu0 0.0
  %183 = vmatprep.subr.mxu0 0.0
  %184 = vmatpush1.msra.mxu0 0.0
  %185 = vmatprep.subr.mxu0 0.0
  %186 = vmatpush1.msra.mxu0 0.0
  %187 = vmatprep.subr.mxu0 0.0
  %188 = vmatpush1.msra.mxu0 0.0
  %189 = vmatprep.subr.mxu0 0.0
  %190 = vmatpush1.msra.mxu0 0.0
  %191 = vmatprep.subr.mxu0 0.0
  %192 = vmatpush1.msra.mxu0 0.0
  %193 = vmatprep.subr.mxu0 0.0
  %194 = vmatpush1.msra.mxu0 0.0
  %195 = vmatprep.subr.mxu0 0.0
  %196 = vmatpush1.msra.mxu0 0.0
  %197 = vmatprep.subr.mxu0 0.0
  %198 = vmatpush1.msra.mxu0 0.0
  %199 = vmatprep.subr.mxu0 0.0
  %200 = vmatpush1.msra.mxu0 0.0
  %201 = vmatprep.subr.mxu0 0.0
  %202 = vmatpush1.msra.mxu0 0.0
  %203 = vmatprep.subr.mxu0 0.0
  %204 = vmatpush1.msra.mxu0 0.0
  %205 = vmatprep.subr.mxu0 0.0
  %206 = vmatpush1.msra.mxu0 0.0
  %207 = vmatprep.subr.mxu0 0.0
  %208 = vmatpush1.msra.mxu0 0.0
  %209 = vmatprep.subr.mxu0 0.0
  %210 = vmatpush1.msra.mxu0 0.0
  %211 = vmatprep.subr.mxu0 0.0
  %212 = vmatpush1.msra.mxu0 0.0
  %213 = vmatprep.subr.mxu0 0.0
  %214 = vmatpush1.msra.mxu0 0.0
  %215 = vmatprep.subr.mxu0 0.0
  %216 = vmatpush1.msra.mxu0 0.0
  %217 = vmatprep.subr.mxu0 0.0
  %218 = vmatpush1.msra.mxu0 0.0
  %219 = vmatprep.subr.mxu0 0.0
  %220 = vmatpush1.msra.mxu0 0.0
  %221 = vmatprep.subr.mxu0 0.0
  %222 = vmatpush1.msra.mxu0 0.0
  %223 = vmatprep.mubr.f32.mxu0 0.0
  %224 = vmatmul.mubr.f32.gmra.mrb[0].mxu0 %v50
  %v225 = vpop.f32.mrb[0].mxu0
  %v226 = vadd.f32 %v27, %v225
  %v227 = vpop.f32.mrb[0].mxu0
  %v228 = vadd.f32 %v27, %v227
  %229 = vmatprep.mubr.f32.mxu0 0.0
  %230 = vmatmul.mubr.f32.gmra.mrb[0].mxu0 %v53
  %v231 = vpop.f32.mrb[0].mxu0
  %v232 = vadd.f32 %v32, %v231
  %v233 = vpop.f32.mrb[0].mxu0
  %v234 = vadd.f32 %v32, %v233
  %235 = vmatprep.mubr.f32.mxu0 0.0
  %236 = vmatmul.mubr.f32.gmra.mrb[0].mxu0 %v56
  %v237 = vpop.f32.mrb[0].mxu0
  %v238 = vadd.f32 %v37, %v237
  %v239 = vpop.f32.mrb[0].mxu0
  %v240 = vadd.f32 %v37, %v239
  %241 = vmatprep.mubr.f32.mxu0 0.0
  %242 = vmatmul.mubr.f32.gmra.mrb[0].mxu0 %v59
  %v243 = vpop.f32.mrb[0].mxu0
  %v244 = vadd.f32 %v42, %v243
  %v245 = vpop.f32.mrb[0].mxu0
  %v246 = vadd.f32 %v42, %v245
  %247 = vdwg.mxu0
  %v248 = vmax.f32 %v137, 0.0
  %v249 = vmax.f32 %v139, 0.0
  %v250 = vmax.f32 %v226, 0.0
  %v251 = vmax.f32 %v228, 0.0
  %v252 = vmax.f32 %v143, 0.0
  %v253 = vmax.f32 %v145, 0.0
  %v254 = vmax.f32 %v232, 0.0
  %v255 = vmax.f32 %v234, 0.0
  %v256 = vmax.f32 %v149, 0.0
  %v257 = vmax.f32 %v151, 0.0
  %v258 = vmax.f32 %v238, 0.0
  %v259 = vmax.f32 %v240, 0.0
  %v260 = vmax.f32 %v155, 0.0
  %v261 = vmax.f32 %v157, 0.0
  %v262 = vmax.f32 %v244, 0.0
  %v263 = vmax.f32 %v246, 0.0
  %264 = vst [vmem:[%s3] sm:$0xff] %v248
  %265 = vst [vmem:[%s3 + $0x8] sm:$0xff] %v249
  %266 = vst [vmem:[%s3 + $0x10] sm:$0xff] %v250
  %267 = vst [vmem:[%s3 + $0x18] sm:$0xff] %v251
  %268 = vst [vmem:[%s3 + $0x20] sm:$0xff] %v252
  %269 = vst [vmem:[%s3 + $0x28] sm:$0xff] %v253
  %270 = vst [vmem:[%s3 + $0x30] sm:$0xff] %v254
  %271 = vst [vmem:[%s3 + $0x38] sm:$0xff] %v255
  %272 = vst [vmem:[%s3 + $0x40] sm:$0xff] %v256
  %273 = vst [vmem:[%s3 + $0x48] sm:$0xff] %v257
  %274 = vst [vmem:[%s3 + $0x50] sm:$0xff] %v258
  %275 = vst [vmem:[%s3 + $0x58] sm:$0xff] %v259
  %276 = vst [vmem:[%s3 + $0x60] sm:$0xff] %v260
  %277 = vst [vmem:[%s3 + $0x68] sm:$0xff] %v261
  %278 = vst [vmem:[%s3 + $0x70] sm:$0xff] %v262
  %279 = vst [vmem:[%s3 + $0x78] sm:$0xff] %v263
  // Predicated region
  $region14: #{trans_basic_conv2d.3} parent=0 // pred_check
    _
  $region15: #{trans_basic_conv2d.3} parent=0 // pred_check_branch
    %281 = sbr.rel (0) target = $region17
  $region16: #{trans_basic_conv2d.3} parent=0 // pred_region
    _
  $region17: #{trans_basic_conv2d.3} parent=0 // pred_fallthru
    _
  // Predicated region
  $region18: #{trans_basic_conv2d.3} parent=0 // pred_check
    _
  $region19: #{trans_basic_conv2d.3} parent=0 // pred_check_branch
    %283 = sbr.rel (0) target = $region21
  $region20: #{trans_basic_conv2d.3} parent=0 // pred_region
    _
  $region21: #{trans_basic_conv2d.3} parent=0 // pred_fallthru
    _

</llo_original>
